<compile_context>
chip_gen: v7x
topology: tpu7x:2x2x1
jax: 0.10.0
libtpu: 0.0.40
codegen_flags: <defaults>
</compile_context>

<pallas_src>
import functools

import jax
import jax.numpy as jnp
from jax.experimental import pallas as pl
from jax.experimental.pallas import tpu as pltpu


def _pick_row_tile(H, W, Cin, pad, row_tile=None):
    """Row-tile height TH (TH | H).  Prefers a single tile; only splits rows
    when the per-tile f32 working set gets large, preferring lane-dense tiles."""
    if row_tile is not None:
        assert H % row_tile == 0, "row_tile must divide H"
        return row_tile
    budget_lanes = max(8 * W, (4 * 1024 * 1024) // (4 * max(Cin, 1)))
    if H * W <= budget_lanes:
        return H
    best = None
    for th in range(H - 1, 0, -1):
        if H % th != 0 or th * W > budget_lanes or th < max(pad, 1):
            continue
        if (th * W) % 128 == 0:
            return th                     # largest lane-dense divisor in budget
        if best is None:
            best = th                     # largest divisor in budget (fallback)
    return best if best is not None else H


def _make_kernel(*, k, pad, H, W, Cin, Cout, TH, R, skip_identity):
    L = TH * W                      # flat (lane) width of one output row tile
    rows_per_slab = TH + 2 * pad    # tile rows + vertical halo
    Wb = rows_per_slab * W          # body lanes of the slab
    # slab layout: [pad corner | rows (r*TH-pad .. r*TH+TH+pad-1) | pad corner]
    dws = [d for d in range(-pad, pad + 1) if d != 0]

    def kernel(x_ref, wdw_ref, b1_ref, wpw_ref, b2_ref, cmask_ref, out_ref, xslab):
        r = pl.program_id(1)

        # ---- build the zero-padded, halo'd slab for THIS row tile ----------
        if pad > 0:
            # Corner lanes are touched by corner taps before masking; they must
            # not hold stale VMEM garbage (0 * NaN == NaN).
            xslab[:, pl.ds(0, pad)] = jnp.zeros((Cin, pad), jnp.float32)
            xslab[:, pl.ds(pad + Wb, pad)] = jnp.zeros((Cin, pad), jnp.float32)

        if R == 1:
            if pad > 0:
                xslab[:, pl.ds(pad, pad * W)] = (
                    jnp.zeros((Cin, pad * W), jnp.float32))
                xslab[:, pl.ds(pad + (pad + H) * W, pad * W)] = (
                    jnp.zeros((Cin, pad * W), jnp.float32))
            xslab[:, pl.ds(pad + pad * W, H * W)] = x_ref[0].astype(jnp.float32)
        else:
            top = (TH + pad) * W    # lanes copied for a boundary tile

            @pl.when(r == 0)
            def _():
                if pad > 0:
                    xslab[:, pl.ds(pad, pad * W)] = (
                        jnp.zeros((Cin, pad * W), jnp.float32))
                xslab[:, pl.ds(pad + pad * W, top)] = (
                    x_ref[0, :, pl.ds(0, top)].astype(jnp.float32))

            @pl.when(jnp.logical_and(r > 0, r < R - 1))
            def _():
                xslab[:, pl.ds(pad, Wb)] = (
                    x_ref[0, :, pl.ds((r * TH - pad) * W, Wb)].astype(jnp.float32))

            @pl.when(r == R - 1)
            def _():
                xslab[:, pl.ds(pad, top)] = (
                    x_ref[0, :, pl.ds(((R - 1) * TH - pad) * W, top)]
                    .astype(jnp.float32))
                if pad > 0:
                    xslab[:, pl.ds(pad + top, pad * W)] = (
                        jnp.zeros((Cin, pad * W), jnp.float32))

        # ---- depthwise conv (bn1 scale folded into the taps), VPU MACs ------
        # One band load per tap row; horizontal taps are static sub-slices of
        # the band; each column mask is applied once per horizontal offset.
        bands = [xslab[:, pl.ds(kh * W, L + 2 * pad)] for kh in range(k)]
        wdw = wdw_ref[...]                                        # (Cin, k*k)
        acc = jnp.zeros((Cin, L), jnp.float32)
        for kw in range(k):
            dw = kw - pad
            part = jnp.zeros((Cin, L), jnp.float32)
            for kh in range(k):
                tap = wdw[:, kh * k + kw:kh * k + kw + 1]         # (Cin, 1)
                part = part + bands[kh][:, kw:kw + L] * tap
            if dw != 0:
                part = part * cmask_ref[pl.ds(dws.index(dw), 1), :]
            acc = acc + part

        # ---- bn1 bias + ReLU -------------------------------------------------
        y1 = jnp.maximum(acc + b1_ref[...], 0.0)                  # (Cin, L) f32

        # ---- 1x1 pointwise conv on the MXU (+ bn2 bias, + identity skip) -----
        y2 = jnp.dot(wpw_ref[...].astype(jnp.bfloat16),
                     y1.astype(jnp.bfloat16),
                     preferred_element_type=jnp.float32)          # (Cout, L)
        y2 = y2 + b2_ref[...]
        if skip_identity:
            y2 = y2 + x_ref[0, :, pl.ds(r * TH * W, L)].astype(jnp.float32)

        out_ref[0] = y2.astype(out_ref.dtype)                     # one full-tile store

    return kernel


def depthwise_conv_block(x_nchw, w_dw, bn1_gamma, bn1_beta, bn1_mean, bn1_var,
                         w_pw, bn2_gamma, bn2_beta, bn2_mean, bn2_var,
                         *, kernel_size, stride, skip, eps=1e-5, row_tile=None):
    """x_nchw: (N, Cin, H, W);  w_dw: (Cin, 1, k, k);  w_pw: (Cout, Cin, 1, 1).

    Activations are carried through HBM in bf16; accumulation is f32.
    Returns a bf16 (N, Cout, H, W) array."""
    N, Cin, H, W = x_nchw.shape
    Cout = w_pw.shape[0]
    k = kernel_size
    pad = k // 2
    # TODO(synk): stride > 1 needs a strided-window gather in the flat-lane
    # layout; only the stride-1 configuration of the module is implemented.
    assert stride == 1, "only stride == 1 is supported by this Pallas kernel"
    skip_identity = (skip == 'identity')
    if skip_identity:
        assert Cin == Cout

    # NCHW with spatial flattened onto the lane axis; bf16 in HBM.
    x_flat = x_nchw.reshape(N, Cin, H * W).astype(jnp.bfloat16)

    # Fold inference-mode BatchNorm into conv weights / bias vectors (f32).
    s1 = (bn1_gamma / jnp.sqrt(bn1_var + eps)).astype(jnp.float32)          # (Cin,)
    b1 = (bn1_beta - bn1_mean * s1).astype(jnp.float32)                     # (Cin,)
    s2 = (bn2_gamma / jnp.sqrt(bn2_var + eps)).astype(jnp.float32)          # (Cout,)
    b2 = (bn2_beta - bn2_mean * s2).astype(jnp.float32)                     # (Cout,)

    wdw = (w_dw[:, 0].reshape(Cin, k * k) * s1[:, None]).astype(jnp.float32)  # (Cin, k*k)
    wpw = (w_pw[:, :, 0, 0] * s2[:, None]).astype(jnp.float32)               # (Cout, Cin)
    b1v = b1[:, None]                                                         # (Cin, 1)
    b2v = b2[:, None]                                                         # (Cout, 1)

    TH = _pick_row_tile(H, W, Cin, pad, row_tile)
    if H % TH != 0 or (H // TH > 1 and TH < pad):
        TH = H
    R = H // TH
    L = TH * W
    Lh = (TH + 2 * pad) * W + 2 * pad

    # Column-validity masks for the horizontal taps, hoisted out of the kernel.
    n_off = max(1, 2 * pad)
    col = jnp.arange(L, dtype=jnp.int32) % W
    mask_rows = [((col + d >= 0) & (col + d < W)).astype(jnp.float32)
                 for d in range(-pad, pad + 1) if d != 0]
    if not mask_rows:
        mask_rows = [jnp.ones((L,), jnp.float32)]
    cmask = jnp.stack(mask_rows)                                              # (n_off, L)

    kernel = _make_kernel(k=k, pad=pad, H=H, W=W, Cin=Cin, Cout=Cout,
                          TH=TH, R=R, skip_identity=skip_identity)

    # Scoped VMEM sized from the actual resident blocks + f32 intermediates.
    req = (2 * Cin * H * W * 2 + 2 * Cout * L * 2 + Cin * Lh * 4
           + (k + 4) * Cin * L * 4 + 2 * Cout * L * 4 + (1 << 20))
    vmem_limit = int(min(max(32 * 2 ** 20, req), 64 * 2 ** 20))

    out_flat = pl.pallas_call(
        kernel,
        out_shape=jax.ShapeDtypeStruct((N, Cout, H * W), jnp.bfloat16),
        grid_spec=pltpu.PrefetchScalarGridSpec(
            num_scalar_prefetch=0,
            grid=(N, R),
            in_specs=[
                pl.BlockSpec((1, Cin, H * W), lambda n, r: (n, 0, 0)),  # image (resident over r)
                pl.BlockSpec((Cin, k * k), lambda n, r: (0, 0)),        # folded dw taps
                pl.BlockSpec((Cin, 1), lambda n, r: (0, 0)),            # bn1 bias
                pl.BlockSpec((Cout, Cin), lambda n, r: (0, 0)),         # folded 1x1 weights
                pl.BlockSpec((Cout, 1), lambda n, r: (0, 0)),           # bn2 bias
                pl.BlockSpec((n_off, L), lambda n, r: (0, 0)),          # column masks
            ],
            out_specs=pl.BlockSpec((1, Cout, L), lambda n, r: (n, 0, r)),
            scratch_shapes=[pltpu.VMEM((Cin, Lh), jnp.float32)],
        ),
        compiler_params=pltpu.CompilerParams(
            dimension_semantics=("parallel", "parallel"),
            vmem_limit_bytes=vmem_limit),
    )(x_flat, wdw, b1v, wpw, b2v, cmask)

    # free (contiguous) reshape back to PyTorch's NCHW
    return out_flat.reshape(N, Cout, H, W)


def _reference(x_nchw, w_dw, bn1_gamma, bn1_beta, bn1_mean, bn1_var,
               w_pw, bn2_gamma, bn2_beta, bn2_mean, bn2_var,
               *, kernel_size, stride, skip, eps=1e-5):
    """Pure-JAX f32 reference (lax.conv) for the correctness check."""
    k = kernel_size
    pad = k // 2
    Cin = x_nchw.shape[1]
    y = jax.lax.conv_general_dilated(
        x_nchw, w_dw, window_strides=(stride, stride),
        padding=((pad, pad), (pad, pad)),
        dimension_numbers=('NCHW', 'OIHW', 'NCHW'),
        feature_group_count=Cin)
    y = (y - bn1_mean[None, :, None, None]) / jnp.sqrt(bn1_var + eps)[None, :, None, None]
    y = y * bn1_gamma[None, :, None, None] + bn1_beta[None, :, None, None]
    y = jnp.maximum(y, 0.0)
    y = jax.lax.conv_general_dilated(
        y, w_pw, window_strides=(1, 1), padding=((0, 0), (0, 0)),
        dimension_numbers=('NCHW', 'OIHW', 'NCHW'))
    y = (y - bn2_mean[None, :, None, None]) / jnp.sqrt(bn2_var + eps)[None, :, None, None]
    y = y * bn2_gamma[None, :, None, None] + bn2_beta[None, :, None, None]
    if skip == 'identity':
        y = y + x_nchw
    return y


if __name__ == "__main__":
    key = jax.random.PRNGKey(0)
    ks = jax.random.split(key, 16)

    # Config A: DepthwiseConv(kernel_size=3, in_ch=8, out_ch=8, skip='identity',
    #                         exp_ratio=1, stride=1)   (exp_ratio unused in fwd)
    N, Cin, H, W = 2, 8, 16, 16
    Cout, k, stride, skip = 8, 3, 1, 'identity'

    x = jax.random.normal(ks[0], (N, Cin, H, W), jnp.float32)
    w_dw = jax.random.normal(ks[1], (Cin, 1, k, k), jnp.float32) * 0.1
    w_pw = jax.random.normal(ks[2], (Cout, Cin, 1, 1), jnp.float32) * 0.1
    bn1_gamma = 1.0 + 0.1 * jax.random.normal(ks[3], (Cin,), jnp.float32)
    bn1_beta = 0.1 * jax.random.normal(ks[4], (Cin,), jnp.float32)
    bn1_mean = 0.05 * jax.random.normal(ks[5], (Cin,), jnp.float32)
    bn1_var = jnp.abs(1.0 + 0.1 * jax.random.normal(ks[6], (Cin,), jnp.float32))
    bn2_gamma = 1.0 + 0.1 * jax.random.normal(ks[7], (Cout,), jnp.float32)
    bn2_beta = 0.1 * jax.random.normal(ks[8], (Cout,), jnp.float32)
    bn2_mean = 0.05 * jax.random.normal(ks[9], (Cout,), jnp.float32)
    bn2_var = jnp.abs(1.0 + 0.1 * jax.random.normal(ks[10], (Cout,), jnp.float32))

    fn = functools.partial(depthwise_conv_block,
                           kernel_size=k, stride=stride, skip=skip)
    out = jax.block_until_ready(
        fn(x, w_dw, bn1_gamma, bn1_beta, bn1_mean, bn1_var,
           w_pw, bn2_gamma, bn2_beta, bn2_mean, bn2_var))
    ref = _reference(x, w_dw, bn1_gamma, bn1_beta, bn1_mean, bn1_var,
                     w_pw, bn2_gamma, bn2_beta, bn2_mean, bn2_var,
                     kernel_size=k, stride=stride, skip=skip)
    assert out.shape == (N, Cout, H, W)
    # bf16 activations in HBM -> loosened tolerance vs. the f32 reference.
    assert jnp.allclose(out.astype(jnp.float32), ref, atol=5e-2, rtol=5e-2), \
        "mismatch vs reference (identity skip)"

    # Config B: no skip, Cout != Cin (exercises the non-skip path).
    Cout_b = 16
    w_pw_b = jax.random.normal(ks[11], (Cout_b, Cin, 1, 1), jnp.float32) * 0.1
    bn2_gamma_b = 1.0 + 0.1 * jax.random.normal(ks[12], (Cout_b,), jnp.float32)
    bn2_beta_b = 0.1 * jax.random.normal(ks[13], (Cout_b,), jnp.float32)
    bn2_mean_b = 0.05 * jax.random.normal(ks[14], (Cout_b,), jnp.float32)
    bn2_var_b = jnp.abs(1.0 + 0.1 * jax.random.normal(ks[15], (Cout_b,), jnp.float32))

    out_b = jax.block_until_ready(
        depthwise_conv_block(x, w_dw, bn1_gamma, bn1_beta, bn1_mean, bn1_var,
                             w_pw_b, bn2_gamma_b, bn2_beta_b, bn2_mean_b, bn2_var_b,
                             kernel_size=k, stride=1, skip='none'))
    ref_b = _reference(x, w_dw, bn1_gamma, bn1_beta, bn1_mean, bn1_var,
                       w_pw_b, bn2_gamma_b, bn2_beta_b, bn2_mean_b, bn2_var_b,
                       kernel_size=k, stride=1, skip='none')
    assert out_b.shape == (N, Cout_b, H, W)
    assert jnp.allclose(out_b.astype(jnp.float32), ref_b, atol=5e-2, rtol=5e-2), \
        "mismatch vs reference (no skip)"

    # Config C: forced multi-row-tile path (R > 1, lane-dense 128-wide tiles).
    out_c = jax.block_until_ready(
        depthwise_conv_block(x, w_dw, bn1_gamma, bn1_beta, bn1_mean, bn1_var,
                             w_pw, bn2_gamma, bn2_beta, bn2_mean, bn2_var,
                             kernel_size=k, stride=1, skip='identity', row_tile=8))
    assert out_c.shape == (N, Cout, H, W)
    assert jnp.allclose(out_c.astype(jnp.float32), ref, atol=5e-2, rtol=5e-2), \
        "mismatch vs reference (multi row-tile)"

    print("KERNEL_OK")
</pallas_src>

<mosaic_0001>
module attributes {stable_mosaic.version = 11 : i64} {
  func.func @kernel(%arg0: i32, %arg1: i32, %arg2: memref<1x8x256xbf16, #tpu.memory_space<vmem>>, %arg3: memref<8x9xf32, #tpu.memory_space<vmem>>, %arg4: memref<8x1xf32, #tpu.memory_space<vmem>>, %arg5: memref<8x8xf32, #tpu.memory_space<vmem>>, %arg6: memref<8x1xf32, #tpu.memory_space<vmem>>, %arg7: memref<2x256xf32, #tpu.memory_space<vmem>>, %arg8: memref<1x8x256xbf16, #tpu.memory_space<vmem>>, %arg9: memref<8x290xf32, #tpu.memory_space<vmem>>) attributes {dimension_semantics = [#tpu.dimension_semantics<parallel>, #tpu.dimension_semantics<parallel>], iteration_bounds = array<i64: 2, 1>, scalar_prefetch = 0 : i64, scratch_operands = 1 : i64, tpu.core_type = #tpu.core_type<tc>, window_params = [{transform_indices = @transform_0, window_bounds = array<i64: 1, 8, 256>}, {pipeline_mode = #tpu.pipeline_mode<synchronous>, transform_indices = @transform_1, window_bounds = array<i64: 8, 9>}, {pipeline_mode = #tpu.pipeline_mode<synchronous>, transform_indices = @transform_2, window_bounds = array<i64: 8, 1>}, {pipeline_mode = #tpu.pipeline_mode<synchronous>, transform_indices = @transform_3, window_bounds = array<i64: 8, 8>}, {pipeline_mode = #tpu.pipeline_mode<synchronous>, transform_indices = @transform_4, window_bounds = array<i64: 8, 1>}, {pipeline_mode = #tpu.pipeline_mode<synchronous>, transform_indices = @transform_5, window_bounds = array<i64: 2, 256>}, {transform_indices = @transform_6, window_bounds = array<i64: 1, 8, 256>}]} {
    %cst = arith.constant 0.000000e+00 : f32
    %0 = vector.broadcast %cst : f32 to vector<8x1xf32>
    %c0 = arith.constant 0 : index
    %c0_0 = arith.constant 0 : index
    %1 = vector.load %arg9[%c0, %c0_0] : memref<8x290xf32, #tpu.memory_space<vmem>>, vector<8x1xf32>
    tpu.vector_store %arg9[%c0, %c0_0], %0 {strides = array<i32>} : memref<8x290xf32, #tpu.memory_space<vmem>>, vector<8x1xf32>,
    %cst_1 = arith.constant 0.000000e+00 : f32
    %2 = vector.broadcast %cst_1 : f32 to vector<8x1xf32>
    %c0_2 = arith.constant 0 : index
    %c289 = arith.constant 289 : index
    %3 = vector.load %arg9[%c0_2, %c289] : memref<8x290xf32, #tpu.memory_space<vmem>>, vector<8x1xf32>
    tpu.vector_store %arg9[%c0_2, %c289], %2 {strides = array<i32>} : memref<8x290xf32, #tpu.memory_space<vmem>>, vector<8x1xf32>,
    %cst_3 = arith.constant 0.000000e+00 : f32
    %4 = vector.broadcast %cst_3 : f32 to vector<8x16xf32>
    %c0_4 = arith.constant 0 : index
    %c1 = arith.constant 1 : index
    %5 = vector.load %arg9[%c0_4, %c1] : memref<8x290xf32, #tpu.memory_space<vmem>>, vector<8x16xf32>
    tpu.vector_store %arg9[%c0_4, %c1], %4 {strides = array<i32>} : memref<8x290xf32, #tpu.memory_space<vmem>>, vector<8x16xf32>,
    %cst_5 = arith.constant 0.000000e+00 : f32
    %6 = vector.broadcast %cst_5 : f32 to vector<8x16xf32>
    %c0_6 = arith.constant 0 : index
    %c273 = arith.constant 273 : index
    %7 = vector.load %arg9[%c0_6, %c273] : memref<8x290xf32, #tpu.memory_space<vmem>>, vector<8x16xf32>
    tpu.vector_store %arg9[%c0_6, %c273], %6 {strides = array<i32>} : memref<8x290xf32, #tpu.memory_space<vmem>>, vector<8x16xf32>,
    %c0_7 = arith.constant 0 : index
    %c0_8 = arith.constant 0 : index
    %c0_9 = arith.constant 0 : index
    %8 = vector.load %arg2[%c0_7, %c0_8, %c0_9] : memref<1x8x256xbf16, #tpu.memory_space<vmem>>, vector<1x8x256xbf16>
    %9 = vector.shape_cast %8 : vector<1x8x256xbf16> to vector<8x256xbf16>
    %10 = arith.extf %9 : vector<8x256xbf16> to vector<8x256xf32>
    %c0_10 = arith.constant 0 : index
    %c17 = arith.constant 17 : index
    %11 = vector.load %arg9[%c0_10, %c17] : memref<8x290xf32, #tpu.memory_space<vmem>>, vector<8x256xf32>
    tpu.vector_store %arg9[%c0_10, %c17], %10 {strides = array<i32>} : memref<8x290xf32, #tpu.memory_space<vmem>>, vector<8x256xf32>,
    %c0_11 = arith.constant 0 : index
    %c0_12 = arith.constant 0 : index
    %12 = vector.load %arg9[%c0_11, %c0_12] : memref<8x290xf32, #tpu.memory_space<vmem>>, vector<8x258xf32>
    %c0_13 = arith.constant 0 : index
    %c16 = arith.constant 16 : index
    %13 = vector.load %arg9[%c0_13, %c16] : memref<8x290xf32, #tpu.memory_space<vmem>>, vector<8x258xf32>
    %c0_14 = arith.constant 0 : index
    %c32 = arith.constant 32 : index
    %14 = vector.load %arg9[%c0_14, %c32] : memref<8x290xf32, #tpu.memory_space<vmem>>, vector<8x258xf32>
    %c0_15 = arith.constant 0 : index
    %c0_16 = arith.constant 0 : index
    %15 = vector.load %arg3[%c0_15, %c0_16] : memref<8x9xf32, #tpu.memory_space<vmem>>, vector<8x9xf32>
    %cst_17 = arith.constant 0.000000e+00 : f32
    %16 = vector.broadcast %cst_17 : f32 to vector<8x256xf32>
    %cst_18 = arith.constant 0.000000e+00 : f32
    %17 = vector.broadcast %cst_18 : f32 to vector<8x256xf32>
    %18 = vector.extract_strided_slice %15 {offsets = [0, 0], sizes = [8, 1], strides = [1, 1]} : vector<8x9xf32> to vector<8x1xf32>
    %19 = vector.extract_strided_slice %12 {offsets = [0, 0], sizes = [8, 256], strides = [1, 1]} : vector<8x258xf32> to vector<8x256xf32>
    %20 = vector.broadcast %18 : vector<8x1xf32> to vector<8x256xf32>
    %21 = arith.mulf %19, %20 : vector<8x256xf32>
    %22 = arith.addf %17, %21 : vector<8x256xf32>
    %23 = vector.extract_strided_slice %15 {offsets = [0, 3], sizes = [8, 1], strides = [1, 1]} : vector<8x9xf32> to vector<8x1xf32>
    %24 = vector.extract_strided_slice %13 {offsets = [0, 0], sizes = [8, 256], strides = [1, 1]} : vector<8x258xf32> to vector<8x256xf32>
    %25 = vector.broadcast %23 : vector<8x1xf32> to vector<8x256xf32>
    %26 = arith.mulf %24, %25 : vector<8x256xf32>
    %27 = arith.addf %22, %26 : vector<8x256xf32>
    %28 = vector.extract_strided_slice %15 {offsets = [0, 6], sizes = [8, 1], strides = [1, 1]} : vector<8x9xf32> to vector<8x1xf32>
    %29 = vector.extract_strided_slice %14 {offsets = [0, 0], sizes = [8, 256], strides = [1, 1]} : vector<8x258xf32> to vector<8x256xf32>
    %30 = vector.broadcast %28 : vector<8x1xf32> to vector<8x256xf32>
    %31 = arith.mulf %29, %30 : vector<8x256xf32>
    %32 = arith.addf %27, %31 : vector<8x256xf32>
    %c0_19 = arith.constant 0 : index
    %c0_20 = arith.constant 0 : index
    %33 = vector.load %arg7[%c0_19, %c0_20] : memref<2x256xf32, #tpu.memory_space<vmem>>, vector<1x256xf32>
    %34 = vector.broadcast %33 : vector<1x256xf32> to vector<8x256xf32>
    %35 = arith.mulf %32, %34 : vector<8x256xf32>
    %36 = arith.addf %16, %35 : vector<8x256xf32>
    %cst_21 = arith.constant 0.000000e+00 : f32
    %37 = vector.broadcast %cst_21 : f32 to vector<8x256xf32>
    %38 = vector.extract_strided_slice %15 {offsets = [0, 1], sizes = [8, 1], strides = [1, 1]} : vector<8x9xf32> to vector<8x1xf32>
    %39 = vector.extract_strided_slice %12 {offsets = [0, 1], sizes = [8, 256], strides = [1, 1]} : vector<8x258xf32> to vector<8x256xf32>
    %40 = vector.broadcast %38 : vector<8x1xf32> to vector<8x256xf32>
    %41 = arith.mulf %39, %40 : vector<8x256xf32>
    %42 = arith.addf %37, %41 : vector<8x256xf32>
    %43 = vector.extract_strided_slice %15 {offsets = [0, 4], sizes = [8, 1], strides = [1, 1]} : vector<8x9xf32> to vector<8x1xf32>
    %44 = vector.extract_strided_slice %13 {offsets = [0, 1], sizes = [8, 256], strides = [1, 1]} : vector<8x258xf32> to vector<8x256xf32>
    %45 = vector.broadcast %43 : vector<8x1xf32> to vector<8x256xf32>
    %46 = arith.mulf %44, %45 : vector<8x256xf32>
    %47 = arith.addf %42, %46 : vector<8x256xf32>
    %48 = vector.extract_strided_slice %15 {offsets = [0, 7], sizes = [8, 1], strides = [1, 1]} : vector<8x9xf32> to vector<8x1xf32>
    %49 = vector.extract_strided_slice %14 {offsets = [0, 1], sizes = [8, 256], strides = [1, 1]} : vector<8x258xf32> to vector<8x256xf32>
    %50 = vector.broadcast %48 : vector<8x1xf32> to vector<8x256xf32>
    %51 = arith.mulf %49, %50 : vector<8x256xf32>
    %52 = arith.addf %47, %51 : vector<8x256xf32>
    %53 = arith.addf %36, %52 : vector<8x256xf32>
    %cst_22 = arith.constant 0.000000e+00 : f32
    %54 = vector.broadcast %cst_22 : f32 to vector<8x256xf32>
    %55 = vector.extract_strided_slice %15 {offsets = [0, 2], sizes = [8, 1], strides = [1, 1]} : vector<8x9xf32> to vector<8x1xf32>
    %56 = vector.extract_strided_slice %12 {offsets = [0, 2], sizes = [8, 256], strides = [1, 1]} : vector<8x258xf32> to vector<8x256xf32>
    %57 = vector.broadcast %55 : vector<8x1xf32> to vector<8x256xf32>
    %58 = arith.mulf %56, %57 : vector<8x256xf32>
    %59 = arith.addf %54, %58 : vector<8x256xf32>
    %60 = vector.extract_strided_slice %15 {offsets = [0, 5], sizes = [8, 1], strides = [1, 1]} : vector<8x9xf32> to vector<8x1xf32>
    %61 = vector.extract_strided_slice %13 {offsets = [0, 2], sizes = [8, 256], strides = [1, 1]} : vector<8x258xf32> to vector<8x256xf32>
    %62 = vector.broadcast %60 : vector<8x1xf32> to vector<8x256xf32>
    %63 = arith.mulf %61, %62 : vector<8x256xf32>
    %64 = arith.addf %59, %63 : vector<8x256xf32>
    %65 = vector.extract_strided_slice %15 {offsets = [0, 8], sizes = [8, 1], strides = [1, 1]} : vector<8x9xf32> to vector<8x1xf32>
    %66 = vector.extract_strided_slice %14 {offsets = [0, 2], sizes = [8, 256], strides = [1, 1]} : vector<8x258xf32> to vector<8x256xf32>
    %67 = vector.broadcast %65 : vector<8x1xf32> to vector<8x256xf32>
    %68 = arith.mulf %66, %67 : vector<8x256xf32>
    %69 = arith.addf %64, %68 : vector<8x256xf32>
    %c1_23 = arith.constant 1 : index
    %c0_24 = arith.constant 0 : index
    %70 = vector.load %arg7[%c1_23, %c0_24] : memref<2x256xf32, #tpu.memory_space<vmem>>, vector<1x256xf32>
    %71 = vector.broadcast %70 : vector<1x256xf32> to vector<8x256xf32>
    %72 = arith.mulf %69, %71 : vector<8x256xf32>
    %73 = arith.addf %53, %72 : vector<8x256xf32>
    %c0_25 = arith.constant 0 : index
    %c0_26 = arith.constant 0 : index
    %74 = vector.load %arg4[%c0_25, %c0_26] : memref<8x1xf32, #tpu.memory_space<vmem>>, vector<8x1xf32>
    %75 = vector.broadcast %74 : vector<8x1xf32> to vector<8x256xf32>
    %76 = arith.addf %73, %75 : vector<8x256xf32>
    %cst_27 = arith.constant 0.000000e+00 : f32
    %77 = vector.broadcast %cst_27 : f32 to vector<8x256xf32>
    %78 = arith.maximumf %76, %77 : vector<8x256xf32>
    %c0_28 = arith.constant 0 : index
    %c0_29 = arith.constant 0 : index
    %79 = vector.load %arg5[%c0_28, %c0_29] : memref<8x8xf32, #tpu.memory_space<vmem>>, vector<8x8xf32>
    %80 = arith.truncf %79 : vector<8x8xf32> to vector<8x8xbf16>
    %81 = arith.truncf %78 : vector<8x256xf32> to vector<8x256xbf16>
    %cst_30 = arith.constant dense<0.000000e+00> : vector<8x256xf32>
    %82 = tpu.matmul %80, %81, %cst_30 {dimension_numbers = #tpu.dot_dimension_numbers<[1], [0], [0], [1], [0, 0, 1, 1], [], []>} : vector<8x8xbf16>, vector<8x256xbf16>, vector<8x256xf32> -> vector<8x256xf32>
    %c0_31 = arith.constant 0 : index
    %c0_32 = arith.constant 0 : index
    %83 = vector.load %arg6[%c0_31, %c0_32] : memref<8x1xf32, #tpu.memory_space<vmem>>, vector<8x1xf32>
    %84 = vector.broadcast %83 : vector<8x1xf32> to vector<8x256xf32>
    %85 = arith.addf %82, %84 : vector<8x256xf32>
    %c16_i32 = arith.constant 16 : i32
    %86 = arith.muli %arg1, %c16_i32 : i32
    %c16_i32_33 = arith.constant 16 : i32
    %87 = arith.muli %86, %c16_i32_33 : i32
    %c0_34 = arith.constant 0 : index
    %c0_35 = arith.constant 0 : index
    %88 = arith.index_cast %87 : i32 to index
    %89 = vector.load %arg2[%c0_34, %c0_35, %88] : memref<1x8x256xbf16, #tpu.memory_space<vmem>>, vector<1x8x256xbf16>
    %90 = vector.shape_cast %89 : vector<1x8x256xbf16> to vector<8x256xbf16>
    %91 = arith.extf %90 : vector<8x256xbf16> to vector<8x256xf32>
    %92 = arith.addf %85, %91 : vector<8x256xf32>
    %93 = arith.truncf %92 : vector<8x256xf32> to vector<8x256xbf16>
    %c0_36 = arith.constant 0 : index
    %c0_37 = arith.constant 0 : index
    %c0_38 = arith.constant 0 : index
    %94 = vector.load %arg8[%c0_36, %c0_37, %c0_38] : memref<1x8x256xbf16, #tpu.memory_space<vmem>>, vector<1x8x256xbf16>
    %95 = vector.shape_cast %94 : vector<1x8x256xbf16> to vector<8x256xbf16>
    %96 = vector.shape_cast %93 : vector<8x256xbf16> to vector<1x8x256xbf16>
    tpu.vector_store %arg8[%c0_36, %c0_37, %c0_38], %96 {strides = array<i32>} : memref<1x8x256xbf16, #tpu.memory_space<vmem>>, vector<1x8x256xbf16>,
    return
  }
  func.func @transform_0(%arg0: i32, %arg1: i32) -> (i32, i32, i32) {
    %c0_i32 = arith.constant 0 : i32
    %c0_i32_0 = arith.constant 0 : i32
    %c0_i32_1 = arith.constant 0 : i32
    return %arg0, %c0_i32, %c0_i32_0 : i32, i32, i32
  }
  func.func @transform_1(%arg0: i32, %arg1: i32) -> (i32, i32) {
    %c0_i32 = arith.constant 0 : i32
    %c0_i32_0 = arith.constant 0 : i32
    %c0_i32_1 = arith.constant 0 : i32
    return %c0_i32, %c0_i32_0 : i32, i32
  }
  func.func @transform_2(%arg0: i32, %arg1: i32) -> (i32, i32) {
    %c0_i32 = arith.constant 0 : i32
    %c0_i32_0 = arith.constant 0 : i32
    %c0_i32_1 = arith.constant 0 : i32
    return %c0_i32, %c0_i32_0 : i32, i32
  }
  func.func @transform_3(%arg0: i32, %arg1: i32) -> (i32, i32) {
    %c0_i32 = arith.constant 0 : i32
    %c0_i32_0 = arith.constant 0 : i32
    %c0_i32_1 = arith.constant 0 : i32
    return %c0_i32, %c0_i32_0 : i32, i32
  }
  func.func @transform_4(%arg0: i32, %arg1: i32) -> (i32, i32) {
    %c0_i32 = arith.constant 0 : i32
    %c0_i32_0 = arith.constant 0 : i32
    %c0_i32_1 = arith.constant 0 : i32
    return %c0_i32, %c0_i32_0 : i32, i32
  }
  func.func @transform_5(%arg0: i32, %arg1: i32) -> (i32, i32) {
    %c0_i32 = arith.constant 0 : i32
    %c0_i32_0 = arith.constant 0 : i32
    %c0_i32_1 = arith.constant 0 : i32
    return %c0_i32, %c0_i32_0 : i32, i32
  }
  func.func @transform_6(%arg0: i32, %arg1: i32) -> (i32, i32, i32) {
    %c0_i32 = arith.constant 0 : i32
    %c0_i32_0 = arith.constant 0 : i32
    return %arg0, %c0_i32, %arg1 : i32, i32, i32
  }
}

</mosaic_0001>

<llo_original>
// kernel: tpu_custom_call.1
$region0: #{tpu_custom_call.1}
  #allocation0 [shape = 'u32[]', space=smem, size = 0x4, offset = 0x4, fixed_abs, tag = 'smem constant byte address 0x4 - core index']
  #allocation1 [shape = 'u32[144,128]{1,0:T(1,128)}', space=vmem, size = 0x12000, scoped, tag = 'internal scratch']
  #allocation2 [shape = 'f32[8,290]{1,0:T(8,128)}', space=vmem, size = 0x3000, scoped, tag = 'scratch operand']
  %s0 = inlined_call_operand.vmem [shape: bf16[2,8,256], index: 0, kind: input, shape index: {}]
  %s1 = inlined_call_operand.hbm [shape: f32[8,9], index: 1, kind: input, shape index: {}]
  %s2 = inlined_call_operand.vmem [shape: f32[8,1], index: 2, kind: input, shape index: {}]
  %s3 = inlined_call_operand.vmem [shape: f32[8,8], index: 3, kind: input, shape index: {}]
  %s4 = inlined_call_operand.vmem [shape: f32[8,1], index: 4, kind: input, shape index: {}]
  %s5 = inlined_call_operand.vmem [shape: f32[2,256], index: 5, kind: input, shape index: {}]
  %s6 = inlined_call_operand.hbm [shape: bf16[2,8,256], index: 6, kind: output, shape index: {}]
  %s7 = sld [smem:[#allocation0]]
  $region61: #{tpu_custom_call.1} parent=0
    _
  %s9 = ssub.s32 1, %s7
  %s10 = scalar_select 0, %s9, %s7
  $region1: #{tpu_custom_call.1} parent=0
    #allocation3 [shape = 'u8[4096]{0}', space=vmem, size = 0x1000, scoped, tag = 'input window, operand 1, single buffered']
    #allocation4 [shape = 's32[2]{0}', space=sflag, size = 0x8, scoped, tag = 'scoped memory for tpu_custom_call.1']
    #allocation5 [shape = 's32[2]{0}', space=sflag, size = 0x8, scoped, tag = 'scoped memory for tpu_custom_call.1']
    #allocation6 [shape = 'u8[8192]{0}', space=vmem, size = 0x2000, scoped, tag = 'output window, operand 0']
    %11 = vsyncpa [#allocation4], 0
    %12 = vsyncpa [#allocation5], 0
    %s13 = scalar_lea.sflag [#allocation5], 1
    %14 = vsyncpa %s13, 0
    loop: start=0, step=1, limit=4
    $region2: #{tpu_custom_call.1} parent=1 // loop_pre_header
      _
    $region3: #{tpu_custom_call.1} parent=1 // loop_header
      %s16 = sphi 0, %s20
      %p17 = scmp.ge.s32.totalorder %s16, 4
      %s23 = sphi 0, %s35
      %s24 = sphi 0, %s31
      %s25 = sphi 0, %s23
      %s26 = sphi 0, %s24
      %s27 = sphi 0, %s25
      %s28 = sphi 0, %s26
      %s38 = sphi 0, %s40
      %s41 = sphi 0, %s38
      %s42 = sphi 0, %s41
      %s58 = sphi 0, %s42
      %s62 = sphi 0, %s62
      %s64 = sphi 0, %s62
      %s65 = sphi 0, %s64
      %s79 = sphi 0, %s65
      %s83 = sphi 0, %s83
      %s85 = sphi 0, %s83
      %s86 = sphi 0, %s85
      %s100 = sphi 0, %s86
      %s104 = sphi 0, %s104
      %s106 = sphi 0, %s104
      %s107 = sphi 0, %s106
      %s121 = sphi 0, %s107
      %s125 = sphi 0, %s125
      %s127 = sphi 0, %s125
      %s128 = sphi 0, %s127
      %s142 = sphi 0, %s128
      %s146 = sphi 0, %s146
      %s148 = sphi 0, %s146
      %s149 = sphi 0, %s148
      %s163 = sphi 0, %s149
      %s171 = sphi 0, %s173
      %s174 = sphi 0, %s171
      %s175 = sphi 0, %s174
      %s191 = sphi 0, %s175
    $region4: #{tpu_custom_call.1} parent=1 // loop_header_branch
      %19 = sbr.rel (%p17) target = $region8
    $region5: #{tpu_custom_call.1} parent=1 // loop_body
      %s21 = ssub.s32 %s16, 1
      %s22 = ssub.s32 %s16, 2
      %s29 = sadd.s32 1, %s24
      %p30 = scmp.ge.s32.totalorder %s29, 1
      %s31 = scalar_select %p30, 0, %s29
      %s32 = sadd.s32 1, %s23
      %s33 = scalar_select %p30, %s32, %s23
      %p34 = scmp.ge.s32.totalorder %s33, 2
      %s35 = scalar_select %p34, 0, %s33
      %s36 = ssub.s32 %s23, %s35
      %p37 = scmp.eq.s32.totalorder %s36, 0
      %s39 = sadd.s32 %s38, 1
      %s40 = scalar_select %p37, %s38, %s39
      %p43 = pneg %p37
      %p44 = scmp.eq.s32.totalorder %s16, 1
      %p45 = por %p43, %p44
      %p46 = scmp.ne.s32.totalorder %s38, %s41
      %p47 = scmp.eq.s32.totalorder %s16, 0
      %p48 = por %p46, %p47
      %p49 = scmp.ne.s32.totalorder %s38, %s41
      %p50 = scmp.eq.s32.totalorder %s21, 1
      %p51 = por %p49, %p50
      %p52 = scmp.ne.s32.totalorder %s41, %s42
      %p53 = scmp.eq.s32.totalorder %s21, 0
      %p54 = por %p52, %p53
      %p55 = scmp.ne.s32.totalorder %s41, %s42
      %p56 = scmp.eq.s32.totalorder %s22, 1
      %p57 = por %p55, %p56
      %p59 = scmp.ne.s32.totalorder %s42, %s58
      %p60 = scmp.eq.s32.totalorder %s22, 0
      %p61 = por %p59, %p60
      %s63 = sadd.s32 %s62, 1
      %p66 = scmp.eq.s32.totalorder %s16, 1
      %p67 = scmp.ne.s32.totalorder %s62, %s64
      %p68 = scmp.eq.s32.totalorder %s16, 0
      %p69 = por %p67, %p68
      %p70 = scmp.ne.s32.totalorder %s62, %s64
      %p71 = scmp.eq.s32.totalorder %s21, 1
      %p72 = por %p70, %p71
      %p73 = scmp.ne.s32.totalorder %s64, %s65
      %p74 = scmp.eq.s32.totalorder %s21, 0
      %p75 = por %p73, %p74
      %p76 = scmp.ne.s32.totalorder %s64, %s65
      %p77 = scmp.eq.s32.totalorder %s22, 1
      %p78 = por %p76, %p77
      %p80 = scmp.ne.s32.totalorder %s65, %s79
      %p81 = scmp.eq.s32.totalorder %s22, 0
      %p82 = por %p80, %p81
      %s84 = sadd.s32 %s83, 1
      %p87 = scmp.eq.s32.totalorder %s16, 1
      %p88 = scmp.ne.s32.totalorder %s83, %s85
      %p89 = scmp.eq.s32.totalorder %s16, 0
      %p90 = por %p88, %p89
      %p91 = scmp.ne.s32.totalorder %s83, %s85
      %p92 = scmp.eq.s32.totalorder %s21, 1
      %p93 = por %p91, %p92
      %p94 = scmp.ne.s32.totalorder %s85, %s86
      %p95 = scmp.eq.s32.totalorder %s21, 0
      %p96 = por %p94, %p95
      %p97 = scmp.ne.s32.totalorder %s85, %s86
      %p98 = scmp.eq.s32.totalorder %s22, 1
      %p99 = por %p97, %p98
      %p101 = scmp.ne.s32.totalorder %s86, %s100
      %p102 = scmp.eq.s32.totalorder %s22, 0
      %p103 = por %p101, %p102
      %s105 = sadd.s32 %s104, 1
      %p108 = scmp.eq.s32.totalorder %s16, 1
      %p109 = scmp.ne.s32.totalorder %s104, %s106
      %p110 = scmp.eq.s32.totalorder %s16, 0
      %p111 = por %p109, %p110
      %p112 = scmp.ne.s32.totalorder %s104, %s106
      %p113 = scmp.eq.s32.totalorder %s21, 1
      %p114 = por %p112, %p113
      %p115 = scmp.ne.s32.totalorder %s106, %s107
      %p116 = scmp.eq.s32.totalorder %s21, 0
      %p117 = por %p115, %p116
      %p118 = scmp.ne.s32.totalorder %s106, %s107
      %p119 = scmp.eq.s32.totalorder %s22, 1
      %p120 = por %p118, %p119
      %p122 = scmp.ne.s32.totalorder %s107, %s121
      %p123 = scmp.eq.s32.totalorder %s22, 0
      %p124 = por %p122, %p123
      %s126 = sadd.s32 %s125, 1
      %p129 = scmp.eq.s32.totalorder %s16, 1
      %p130 = scmp.ne.s32.totalorder %s125, %s127
      %p131 = scmp.eq.s32.totalorder %s16, 0
      %p132 = por %p130, %p131
      %p133 = scmp.ne.s32.totalorder %s125, %s127
      %p134 = scmp.eq.s32.totalorder %s21, 1
      %p135 = por %p133, %p134
      %p136 = scmp.ne.s32.totalorder %s127, %s128
      %p137 = scmp.eq.s32.totalorder %s21, 0
      %p138 = por %p136, %p137
      %p139 = scmp.ne.s32.totalorder %s127, %s128
      %p140 = scmp.eq.s32.totalorder %s22, 1
      %p141 = por %p139, %p140
      %p143 = scmp.ne.s32.totalorder %s128, %s142
      %p144 = scmp.eq.s32.totalorder %s22, 0
      %p145 = por %p143, %p144
      %s147 = sadd.s32 %s146, 1
      %p150 = scmp.eq.s32.totalorder %s16, 1
      %p151 = scmp.ne.s32.totalorder %s146, %s148
      %p152 = scmp.eq.s32.totalorder %s16, 0
      %p153 = por %p151, %p152
      %p154 = scmp.ne.s32.totalorder %s146, %s148
      %p155 = scmp.eq.s32.totalorder %s21, 1
      %p156 = por %p154, %p155
      %p157 = scmp.ne.s32.totalorder %s148, %s149
      %p158 = scmp.eq.s32.totalorder %s21, 0
      %p159 = por %p157, %p158
      %p160 = scmp.ne.s32.totalorder %s148, %s149
      %p161 = scmp.eq.s32.totalorder %s22, 1
      %p162 = por %p160, %p161
      %p164 = scmp.ne.s32.totalorder %s149, %s163
      %p165 = scmp.eq.s32.totalorder %s22, 0
      %p166 = por %p164, %p165
      %s167 = ssub.s32 %s23, %s35
      %s168 = ssub.s32 %s24, %s31
      %s169 = sor.u32 %s167, %s168
      %p170 = scmp.eq.s32.totalorder %s169, 0
      %s172 = sadd.s32 %s171, 1
      %s173 = scalar_select %p170, %s171, %s172
      %p176 = pneg %p170
      %p177 = scmp.eq.s32.totalorder %s16, 1
      %p178 = por %p176, %p177
      %p179 = scmp.ne.s32.totalorder %s171, %s174
      %p180 = scmp.eq.s32.totalorder %s16, 0
      %p181 = por %p179, %p180
      %p182 = scmp.ne.s32.totalorder %s171, %s174
      %p183 = scmp.eq.s32.totalorder %s21, 1
      %p184 = por %p182, %p183
      %p185 = scmp.ne.s32.totalorder %s174, %s175
      %p186 = scmp.eq.s32.totalorder %s21, 0
      %p187 = por %p185, %p186
      %p188 = scmp.ne.s32.totalorder %s174, %s175
      %p189 = scmp.eq.s32.totalorder %s22, 1
      %p190 = por %p188, %p189
      %p192 = scmp.ne.s32.totalorder %s175, %s191
      %p193 = scmp.eq.s32.totalorder %s22, 0
      %p194 = por %p192, %p193
      %p195 = scmp.le.s32.totalorder 1, %s16
      %p196 = scmp.lt.s32.totalorder %s16, 3
      %p197 = pnand %p195, %p196
      %p198 = pneg %p197
      // Predicated region
      $region9: #{tpu_custom_call.1} parent=5 // pred_check
        _
      $region10: #{tpu_custom_call.1} parent=5 // pred_check_branch
        %200 = sbr.rel (%p197) target = $region12
      $region11: #{tpu_custom_call.1} parent=5 // pred_region
        %s201 = ssub.s32 %s16, 1
        // Predicated region
        $region13: #{tpu_custom_call.1} parent=11 // pred_check
          %p202 = pneg %p75
        $region14: #{tpu_custom_call.1} parent=11 // pred_check_branch
          %204 = sbr.rel (%p202) target = $region16
        $region15: #{tpu_custom_call.1} parent=11 // pred_region
          %s206 = ssub.s32 128, 128
          %207 = vsyncadd [#allocation4], %s206
          %s209 = sshll.u32 [#allocation3], 4
          %s210 = int_to_ptr.vmem [resolvable:$true] %s209
          %212 = dma.hbm_to_vmem [thread:$0]  %s1, 128, %s210, [#allocation4]
        $region16: #{tpu_custom_call.1} parent=11 // pred_fallthru
          _
        // Predicated region
        $region17: #{tpu_custom_call.1} parent=11 // pred_check
          %p213 = pneg %p96
        $region18: #{tpu_custom_call.1} parent=11 // pred_check_branch
          %215 = sbr.rel (%p213) target = $region20
        $region19: #{tpu_custom_call.1} parent=11 // pred_region
          _
        $region20: #{tpu_custom_call.1} parent=11 // pred_fallthru
          _
        // Predicated region
        $region21: #{tpu_custom_call.1} parent=11 // pred_check
          %p216 = pneg %p117
        $region22: #{tpu_custom_call.1} parent=11 // pred_check_branch
          %218 = sbr.rel (%p216) target = $region24
        $region23: #{tpu_custom_call.1} parent=11 // pred_region
          _
        $region24: #{tpu_custom_call.1} parent=11 // pred_fallthru
          _
        // Predicated region
        $region25: #{tpu_custom_call.1} parent=11 // pred_check
          %p219 = pneg %p138
        $region26: #{tpu_custom_call.1} parent=11 // pred_check_branch
          %221 = sbr.rel (%p219) target = $region28
        $region27: #{tpu_custom_call.1} parent=11 // pred_region
          _
        $region28: #{tpu_custom_call.1} parent=11 // pred_fallthru
          _
        // Predicated region
        $region29: #{tpu_custom_call.1} parent=11 // pred_check
          %p222 = pneg %p159
        $region30: #{tpu_custom_call.1} parent=11 // pred_check_branch
          %224 = sbr.rel (%p222) target = $region32
        $region31: #{tpu_custom_call.1} parent=11 // pred_region
          _
        $region32: #{tpu_custom_call.1} parent=11 // pred_fallthru
          _
      $region12: #{tpu_custom_call.1} parent=5 // pred_fallthru
        _
      %p225 = scmp.lt.s32.totalorder %s16, 2
      // Predicated region
      $region33: #{tpu_custom_call.1} parent=5 // pred_check
        %p226 = pneg %p225
      $region34: #{tpu_custom_call.1} parent=5 // pred_check_branch
        %228 = sbr.rel (%p226) target = $region36
      $region35: #{tpu_custom_call.1} parent=5 // pred_region
        // Predicated region
        $region37: #{tpu_custom_call.1} parent=35 // pred_check
          %p229 = pneg %p48
        $region38: #{tpu_custom_call.1} parent=35 // pred_check_branch
          %231 = sbr.rel (%p229) target = $region40
        $region39: #{tpu_custom_call.1} parent=35 // pred_region
          %p232 = scmp.lt.s32.totalorder %s23, 1
          %s233 = scalar_select %p232, %s23, 1
          %s234 = smul.addr %s233, 2
          %s235 = smul.addr %s234, 4
          %s236 = scalar_lea.vmem %s0, %s235
        $region40: #{tpu_custom_call.1} parent=35 // pred_fallthru
          _
      $region36: #{tpu_custom_call.1} parent=5 // pred_fallthru
        _
      %p237 = scmp.le.s32.totalorder 1, %s16
      %p238 = scmp.lt.s32.totalorder %s16, 3
      %p239 = pnand %p237, %p238
      %p240 = pneg %p239
      // Predicated region
      $region41: #{tpu_custom_call.1} parent=5 // pred_check
        _
      $region42: #{tpu_custom_call.1} parent=5 // pred_check_branch
        %242 = sbr.rel (%p239) target = $region44
      $region43: #{tpu_custom_call.1} parent=5 // pred_region
        %s243 = ssub.s32 %s16, 1
        // Predicated region
        $region45: #{tpu_custom_call.1} parent=43 // pred_check
          %p244 = pneg %p75
        $region46: #{tpu_custom_call.1} parent=43 // pred_check_branch
          %246 = sbr.rel (%p244) target = $region48
        $region47: #{tpu_custom_call.1} parent=43 // pred_region
          %247 = dma.done [#allocation4], 128
        $region48: #{tpu_custom_call.1} parent=43 // pred_fallthru
          _
        %p248 = scmp.lt.s32.totalorder %s25, 1
        %s249 = scalar_select %p248, %s25, 1
        %s250 = smul.addr %s249, 2
        %s251 = smul.addr %s250, 4
        %s252 = scalar_lea.vmem %s0, %s251
        %p253 = pneg %p54
        %p254 = pneg %p51
        %p255 = pneg %p75
        %p256 = pneg %p72
        %p257 = pneg %p96
        %p258 = pneg %p93
        %p259 = pneg %p117
        %p260 = pneg %p114
        %p261 = pneg %p138
        %p262 = pneg %p135
        %p263 = pneg %p159
        %p264 = pneg %p156
        %p265 = pneg %p187
        %p266 = pneg %p184
        %s267 = sand.u32 %s174, 1
        %s268 = scalar_lea.sflag [#allocation5], %s267
        %s269 = sand.u32 %s174, 1
        %s270 = smul.addr %s269, 8
        %s271 = scalar_lea.vmem [#allocation6], %s270
        %p272 = scmp.lt.s32.totalorder %s25, 1
        %s273 = scalar_select %p272, %s25, 1
        %s274 = smul.addr %s273, 2
        %s275 = smul.addr %s274, 4
        %s276 = scalar_lea.vmem %s0, %s275
        %s277 = smul.u32 2, %s26
        %vm279 = vcmask 7168
        %280 = vst.msk [vmem:[#allocation2] sm:$0xff] %vm279, 0.0
        %vm281 = vcmask 277768
        %282 = vst.msk [vmem:[#allocation2 + $0x10] sm:$0xff] %vm281, 0.0
        %vm283 = vcmask 138248
        %284 = vst.msk [vmem:[#allocation2] sm:$0xff] %vm283, 0.0
        %vm285 = vcmask 269448
        %286 = vst.msk [vmem:[#allocation2 + $0x10] sm:$0xff] %vm285, 0.0
        %v287 = vld [vmem:[%s276] sm:$0xff]
        %v288 = vunpack.c.l.bf16 %v287
        %v289 = vunpack.c.h.bf16 %v287
        %292 = vrot.lane.b32.xlu0 %v288, 17
        %v293 = vpop.permute.xlu0 %292
        %294 = vrot.lane.b32.xlu0 %v289, 17
        %v295 = vpop.permute.xlu0 %294
        %vm296 = vcmask 138240
        %v297 = vsel %vm296, %v293, %v295
        %vm301 = vcmask 1047688
        %302 = vst.msk [vmem:[#allocation2] sm:$0xff] %vm301, %v293
        %303 = vst [vmem:[#allocation2 + $0x8] sm:$0xff] %v297
        %304 = vst.msk [vmem:[#allocation2 + $0x10] sm:$0xff] %vm296, %v295
        %v305 = vld [vmem:[#allocation2] sm:$0xff]
        %v306 = vld [vmem:[#allocation2 + $0x8] sm:$0xff]
        %v307 = vld [vmem:[#allocation2 + $0x10] sm:$0xff]
        %v308 = vld [vmem:[#allocation3] sm:$0xff]
        %310 = vset.pattern.permute.xlu0 0
        %311 = vperm.xlu0 %310, %v308
        %v312 = vpop.permute.xlu0 %311
        %v314 = vmul.f32 %v305, %v312
        %v315 = vmul.f32 %v306, %v312
        %v316 = vadd.f32 %v314, 0.0
        %v317 = vadd.f32 %v315, 0.0
        %318 = vset.pattern.permute.xlu0 3
        %319 = vperm.xlu0 %318, %v308
        %v320 = vpop.permute.xlu0 %319
        %v322 = vmul.f32 %v305, %v320
        %v323 = vmul.f32 %v306, %v320
        %v324 = vmul.f32 %v307, %v320
        %328 = vrot.lane.b32.xlu0 %v322, 112
        %v329 = vpop.permute.xlu0 %328
        %330 = vrot.lane.b32.xlu0 %v323, 112
        %v331 = vpop.permute.xlu0 %330
        %332 = vrot.lane.b32.xlu0 %v324, 112
        %v333 = vpop.permute.xlu0 %332
        %vm334 = vcmask 916480
        %v335 = vsel %vm334, %v329, %v331
        %v336 = vsel %vm334, %v331, %v333
        %v339 = vadd.f32 %v316, %v335
        %v340 = vadd.f32 %v317, %v336
        %341 = vset.pattern.permute.xlu0 6
        %342 = vperm.xlu0 %341, %v308
        %v343 = vpop.permute.xlu0 %342
        %v345 = vmul.f32 %v305, %v343
        %v346 = vmul.f32 %v306, %v343
        %v347 = vmul.f32 %v307, %v343
        %351 = vrot.lane.b32.xlu0 %v345, 96
        %v352 = vpop.permute.xlu0 %351
        %353 = vrot.lane.b32.xlu0 %v346, 96
        %v354 = vpop.permute.xlu0 %353
        %355 = vrot.lane.b32.xlu0 %v347, 96
        %v356 = vpop.permute.xlu0 %355
        %vm357 = vcmask 785408
        %v358 = vsel %vm357, %v352, %v354
        %v359 = vsel %vm357, %v354, %v356
        %v362 = vadd.f32 %v339, %v358
        %v363 = vadd.f32 %v340, %v359
        %v364 = vld [vmem:[%s5] ss:$2 sm:$0x3]
        %v366 = vlaneseq
        %v367 = vshrl.u32 %v366, 7
        %v368 = vsub.s32 0, %v367
        %v369 = vrot.slane %v364, %v368
        %v370 = vlaneseq
        %v371 = vshrl.u32 %v370, 7
        %v372 = vsub.s32 1, %v371
        %v373 = vrot.slane %v364, %v372
        %v376 = vmul.f32 %v362, %v369
        %v377 = vmul.f32 %v363, %v373
        %v378 = vadd.f32 %v376, 0.0
        %v379 = vadd.f32 %v377, 0.0
        %380 = vset.pattern.permute.xlu0 1
        %381 = vperm.xlu0 %380, %v308
        %v382 = vpop.permute.xlu0 %381
        %v384 = vmul.f32 %v305, %v382
        %v385 = vmul.f32 %v306, %v382
        %v386 = vmul.f32 %v307, %v382
        %v387 = vadd.f32 %v384, 0.0
        %v388 = vadd.f32 %v385, 0.0
        %v389 = vadd.f32 %v386, 0.0
        %390 = vset.pattern.permute.xlu0 4
        %391 = vperm.xlu0 %390, %v308
        %v392 = vpop.permute.xlu0 %391
        %v394 = vmul.f32 %v305, %v392
        %v395 = vmul.f32 %v306, %v392
        %v396 = vmul.f32 %v307, %v392
        %400 = vrot.lane.b32.xlu0 %v394, 112
        %v401 = vpop.permute.xlu0 %400
        %402 = vrot.lane.b32.xlu0 %v395, 112
        %v403 = vpop.permute.xlu0 %402
        %404 = vrot.lane.b32.xlu0 %v396, 112
        %v405 = vpop.permute.xlu0 %404
        %v406 = vsel %vm334, %v401, %v403
        %v407 = vsel %vm334, %v403, %v405
        %v411 = vadd.f32 %v387, %v406
        %v412 = vadd.f32 %v388, %v407
        %v413 = vadd.f32 %v389, %v405
        %414 = vset.pattern.permute.xlu0 7
        %415 = vperm.xlu0 %414, %v308
        %v416 = vpop.permute.xlu0 %415
        %v418 = vmul.f32 %v305, %v416
        %v419 = vmul.f32 %v306, %v416
        %v420 = vmul.f32 %v307, %v416
        %424 = vrot.lane.b32.xlu0 %v418, 96
        %v425 = vpop.permute.xlu0 %424
        %426 = vrot.lane.b32.xlu0 %v419, 96
        %v427 = vpop.permute.xlu0 %426
        %428 = vrot.lane.b32.xlu0 %v420, 96
        %v429 = vpop.permute.xlu0 %428
        %v430 = vsel %vm357, %v425, %v427
        %v431 = vsel %vm357, %v427, %v429
        %v435 = vadd.f32 %v411, %v430
        %v436 = vadd.f32 %v412, %v431
        %v437 = vadd.f32 %v413, %v429
        %441 = vrot.lane.b32.xlu0 %v435, 127
        %v442 = vpop.permute.xlu0 %441
        %443 = vrot.lane.b32.xlu0 %v436, 127
        %v444 = vpop.permute.xlu0 %443
        %445 = vrot.lane.b32.xlu0 %v437, 127
        %v446 = vpop.permute.xlu0 %445
        %vm447 = vcmask 1039360
        %v448 = vsel %vm447, %v442, %v444
        %v449 = vsel %vm447, %v444, %v446
        %v452 = vadd.f32 %v378, %v448
        %v453 = vadd.f32 %v379, %v449
        %454 = vset.pattern.permute.xlu0 2
        %455 = vperm.xlu0 %454, %v308
        %v456 = vpop.permute.xlu0 %455
        %v458 = vmul.f32 %v305, %v456
        %v459 = vmul.f32 %v306, %v456
        %v460 = vmul.f32 %v307, %v456
        %v461 = vadd.f32 %v458, 0.0
        %v462 = vadd.f32 %v459, 0.0
        %v463 = vadd.f32 %v460, 0.0
        %464 = vset.pattern.permute.xlu0 5
        %465 = vperm.xlu0 %464, %v308
        %v466 = vpop.permute.xlu0 %465
        %v468 = vmul.f32 %v305, %v466
        %v469 = vmul.f32 %v306, %v466
        %v470 = vmul.f32 %v307, %v466
        %474 = vrot.lane.b32.xlu0 %v468, 112
        %v475 = vpop.permute.xlu0 %474
        %476 = vrot.lane.b32.xlu0 %v469, 112
        %v477 = vpop.permute.xlu0 %476
        %478 = vrot.lane.b32.xlu0 %v470, 112
        %v479 = vpop.permute.xlu0 %478
        %v480 = vsel %vm334, %v475, %v477
        %v481 = vsel %vm334, %v477, %v479
        %v485 = vadd.f32 %v461, %v480
        %v486 = vadd.f32 %v462, %v481
        %v487 = vadd.f32 %v463, %v479
        %488 = vset.pattern.permute.xlu0 8
        %489 = vperm.xlu0 %488, %v308
        %v490 = vpop.permute.xlu0 %489
        %v492 = vmul.f32 %v305, %v490
        %v493 = vmul.f32 %v306, %v490
        %v494 = vmul.f32 %v307, %v490
        %498 = vrot.lane.b32.xlu0 %v492, 96
        %v499 = vpop.permute.xlu0 %498
        %500 = vrot.lane.b32.xlu0 %v493, 96
        %v501 = vpop.permute.xlu0 %500
        %502 = vrot.lane.b32.xlu0 %v494, 96
        %v503 = vpop.permute.xlu0 %502
        %v504 = vsel %vm357, %v499, %v501
        %v505 = vsel %vm357, %v501, %v503
        %v509 = vadd.f32 %v485, %v504
        %v510 = vadd.f32 %v486, %v505
        %v511 = vadd.f32 %v487, %v503
        %s512 = scalar_lea.vmem %s5, 1
        %v513 = vld [vmem:[%s512] ss:$2 sm:$0x3]
        %v515 = vlaneseq
        %v516 = vshrl.u32 %v515, 7
        %v517 = vsub.s32 0, %v516
        %v518 = vrot.slane %v513, %v517
        %v519 = vlaneseq
        %v520 = vshrl.u32 %v519, 7
        %v521 = vsub.s32 1, %v520
        %v522 = vrot.slane %v513, %v521
        %523 = vrot.lane.b32.xlu0 %v518, 2
        %v524 = vpop.permute.xlu0 %523
        %525 = vrot.lane.b32.xlu0 %v522, 2
        %v526 = vpop.permute.xlu0 %525
        %vm527 = vcmask 15360
        %v528 = vsel %vm527, %v524, %v526
        %v532 = vmul.f32 %v509, %v524
        %v533 = vmul.f32 %v510, %v528
        %v534 = vmul.f32 %v511, %v526
        %538 = vrot.lane.b32.xlu0 %v532, 126
        %v539 = vpop.permute.xlu0 %538
        %540 = vrot.lane.b32.xlu0 %v533, 126
        %v541 = vpop.permute.xlu0 %540
        %542 = vrot.lane.b32.xlu0 %v534, 126
        %v543 = vpop.permute.xlu0 %542
        %vm544 = vcmask 1031168
        %v545 = vsel %vm544, %v539, %v541
        %v546 = vsel %vm544, %v541, %v543
        %v549 = vadd.f32 %v452, %v545
        %v550 = vadd.f32 %v453, %v546
        %v551 = vld [vmem:[%s2] sm:$0xff]
        %553 = vset.pattern.permute.xlu0 0
        %554 = vperm.xlu0 %553, %v551
        %v555 = vpop.permute.xlu0 %554
        %v557 = vadd.f32 %v549, %v555
        %v558 = vadd.f32 %v550, %v555
        %v559 = vmax.f32 %v557, 0.0
        %v560 = vmax.f32 %v558, 0.0
        %v561 = vld [vmem:[%s3] sm:$0xff]
        %v562 = vpack.c.bf16 %v561, %v561
        %v563 = vpack.c.bf16 %v559, %v559
        %v564 = vpack.c.bf16 %v560, %v560
        %v565 = vld [vmem:[%s4] sm:$0xff]
        %567 = vset.pattern.permute.xlu0 0
        %568 = vperm.xlu0 %567, %v565
        %v569 = vpop.permute.xlu0 %568
        %vm571 = vcmask 64512
        %v573 = vsel %vm571, %v562, 0
        %vm575 = vcmask 1043456
        %v577 = vsel %vm575, %v563, 0
        %v580 = vsel %vm575, %v564, 0
        %582 = vmatprep.subr.bf16.mxu0 %v580
        %583 = vmatpush1.bf16.msra.mxu0 %v577
        %584 = vmatprep.subr.bf16.mxu0 0
        %585 = vmatpush1.bf16.msra.mxu0 0
        %586 = vmatprep.subr.bf16.mxu0 0
        %587 = vmatpush1.bf16.msra.mxu0 0
        %588 = vmatprep.subr.bf16.mxu0 0
        %589 = vmatpush1.bf16.msra.mxu0 0
        %590 = vmatprep.subr.bf16.mxu0 0
        %591 = vmatpush1.bf16.msra.mxu0 0
        %592 = vmatprep.subr.bf16.mxu0 0
        %593 = vmatpush1.bf16.msra.mxu0 0
        %594 = vmatprep.subr.bf16.mxu0 0
        %595 = vmatpush1.bf16.msra.mxu0 0
        %596 = vmatprep.subr.bf16.mxu0 0
        %597 = vmatpush1.bf16.msra.mxu0 0
        %598 = vmatprep.subr.bf16.mxu0 0
        %599 = vmatpush1.bf16.msra.mxu0 0
        %600 = vmatprep.subr.bf16.mxu0 0
        %601 = vmatpush1.bf16.msra.mxu0 0
        %602 = vmatprep.subr.bf16.mxu0 0
        %603 = vmatpush1.bf16.msra.mxu0 0
        %604 = vmatprep.subr.bf16.mxu0 0
        %605 = vmatpush1.bf16.msra.mxu0 0
        %606 = vmatprep.subr.bf16.mxu0 0
        %607 = vmatpush1.bf16.msra.mxu0 0
        %608 = vmatprep.subr.bf16.mxu0 0
        %609 = vmatpush1.bf16.msra.mxu0 0
        %610 = vmatprep.subr.bf16.mxu0 0
        %611 = vmatpush1.bf16.msra.mxu0 0
        %612 = vmatprep.subr.bf16.mxu0 0
        %613 = vmatpush1.bf16.msra.mxu0 0
        %614 = vmatprep.mubr.bf16.mxu0 0
        %615 = vmatmul.mubr.bf16.gmra.mrb[0].mxu0 %v573
        %v616 = vpop.f32.mrb[0].mxu0
        %v617 = vadd.f32 %v569, %v616
        %v618 = vpop.f32.mrb[0].mxu0
        %v619 = vadd.f32 %v569, %v618
        %v620 = vpop.f32.mrb[0].mxu0
        %v621 = vpop.f32.mrb[0].mxu0
        %622 = vdwg.mxu0
        %s623 = smul.u32 %s26, 256
        %s624 = sshra.s32 %s623, 7
        %s625 = sand.u32 %s623, 127
        %s626 = smul.addr %s624, 4
        %s627 = scalar_lea.vmem %s276, %s626
        %v628 = vld [vmem:[%s627] sm:$0xff]
        %v629 = vunpack.c.l.bf16 %v628
        %v630 = vunpack.c.h.bf16 %v628
        %v631 = vadd.f32 %v617, %v629
        %v632 = vadd.f32 %v619, %v630
        %v633 = vpack.c.bf16 %v631, %v631
        %v634 = vpack.c.bf16 %v632, %v632
        %v637 = vunpack.c.l.b16 %v633
        %v638 = vunpack.c.l.b16 %v634
        %v639 = vpack.c.b16 %v638, %v637
        %641 = vst [vmem:[%s271] sm:$0xff] %v639
        %s642 = sand.u32 %s174, 1
        %s643 = scalar_lea.sflag [#allocation5], %s642
        %s644 = sand.u32 %s174, 1
        %s645 = smul.addr %s644, 8
        %s646 = scalar_lea.vmem [#allocation6], %s645
        // Predicated region
        $region49: #{tpu_custom_call.1} parent=43 // pred_check
          %p647 = pneg %p184
        $region50: #{tpu_custom_call.1} parent=43 // pred_check_branch
          %649 = sbr.rel (%p647) target = $region52
        $region51: #{tpu_custom_call.1} parent=43 // pred_region
          %s650 = smul.u32 2, %s26
          %s652 = ssub.s32 128, 128
          %653 = vsyncadd %s643, %s652
          %s654 = smul.addr %s25, 2
          %s655 = sadd.s32 %s650, %s654
          %s656 = smul.addr %s655, 64
          %s657 = scalar_lea.hbm %s6, %s656
          %s659 = sshll.u32 %s646, 4
          %s660 = int_to_ptr.vmem [resolvable:$true] %s659
          %662 = dma.vmem_to_hbm [thread:$0]  %s660, 128, %s657, %s643
        $region52: #{tpu_custom_call.1} parent=43 // pred_fallthru
          _
      $region44: #{tpu_custom_call.1} parent=5 // pred_fallthru
        _
      %p663 = scmp.le.s32.totalorder 2, %s16
      // Predicated region
      $region53: #{tpu_custom_call.1} parent=5 // pred_check
        %p664 = pneg %p663
      $region54: #{tpu_custom_call.1} parent=5 // pred_check_branch
        %666 = sbr.rel (%p664) target = $region56
      $region55: #{tpu_custom_call.1} parent=5 // pred_region
        %s667 = ssub.s32 %s16, 2
        // Predicated region
        $region57: #{tpu_custom_call.1} parent=55 // pred_check
          %p668 = pneg %p190
        $region58: #{tpu_custom_call.1} parent=55 // pred_check_branch
          %670 = sbr.rel (%p668) target = $region60
        $region59: #{tpu_custom_call.1} parent=55 // pred_region
          %s671 = sand.u32 %s175, 1
          %s672 = scalar_lea.sflag [#allocation5], %s671
          %s673 = sand.u32 %s175, 1
          %s674 = smul.addr %s673, 8
          %s675 = scalar_lea.vmem [#allocation6], %s674
          %676 = dma.done %s672, 128
        $region60: #{tpu_custom_call.1} parent=55 // pred_fallthru
          _
      $region56: #{tpu_custom_call.1} parent=5 // pred_fallthru
        _
    $region6: #{tpu_custom_call.1} parent=1 // loop_footer
      %s20 = sadd.s32 1, %s16
    $region7: #{tpu_custom_call.1} parent=1 // loop_footer_branch
      %15 = sbr.rel target = $region3
    $region8: #{tpu_custom_call.1} parent=1 // loop_exit
      _
    %677 = vsyncpa [#allocation4], 1
    %s678 = scalar_lea.sflag [#allocation4], 1
    %679 = vsyncpa %s678, 1
    %680 = vsyncpa [#allocation5], 1
    %s681 = scalar_lea.sflag [#allocation5], 1
    %682 = vsyncpa %s681, 1

</llo_original>
